<compile_context>
chip_gen: v5e
topology: v5e:2x2
jax: 0.10.0
libtpu: 0.0.40
codegen_flags: <defaults>
</compile_context>

<pallas_src>
import jax
import jax.numpy as jnp
from jax.experimental import pallas as pl
from jax.experimental.pallas import tpu as pltpu

BN_EPS = 1e-5
LANE = 128


def mlp_kernel(x_ref, w1_ref, b1_ref, gamma_ref, beta_ref, w2_ref, b2_ref,
               o_ref, acc_ref):
    # grid = (D_out tiles [parallel], H tiles [arbitrary / reduction])
    k = pl.program_id(1)

    @pl.when(k == 0)
    def _init():
        acc_ref[...] = jnp.zeros_like(acc_ref)

    # ---- Linear 1 tile: (B, D_in) @bf16 (D_in, tH) -> f32, + bias ----
    h = jnp.dot(x_ref[...], w1_ref[...], preferred_element_type=jnp.float32)
    h = h + b1_ref[...]

    # ---- BatchNorm1d (training mode, biased batch stats), folded to scale/shift ----
    mean = jnp.mean(h, axis=0, keepdims=True)                         # (1, tH)
    var = jnp.mean(h * h, axis=0, keepdims=True) - mean * mean        # E[h^2]-E[h]^2
    scale = gamma_ref[...] * jax.lax.rsqrt(jnp.maximum(var, 0.0) + BN_EPS)
    shift = beta_ref[...] - mean * scale

    # ---- ReLU (f32 on the VPU) ----
    h_act = jnp.maximum(h * scale + shift, 0.0)

    # ---- Linear 2 partial product, accumulated over hidden tiles ----
    acc_ref[...] += jnp.dot(h_act.astype(jnp.bfloat16), w2_ref[...],
                            preferred_element_type=jnp.float32)

    @pl.when(k == pl.num_programs(1) - 1)
    def _finalize():
        o_ref[...] = (acc_ref[...] + b2_ref[...]).astype(o_ref.dtype)


def _round_up(n, m):
    return ((n + m - 1) // m) * m


def _pad2(a, shape):
    return jnp.pad(a, [(0, s - d) for d, s in zip(a.shape, shape)])


def _pick_tile(total, preferred=256):
    # total is already a multiple of 128.  Prefer 256-wide tiles (fills the v6e/v7x
    # 256-wide MXU); fall back to 128 (v5e sweet spot / small dims).
    # TODO(synk): on v7x with very large dims, halve `preferred` to respect 64 MiB VMEM.
    for t in (preferred, LANE):
        if total % t == 0:
            return min(t, total)
    return LANE


def mlp_network(x, w1, b1, gamma, beta, w2, b2):
    """x: (B, D_in); w1: (D_in, H); b1/gamma/beta: (1, H); w2: (H, D_out); b2: (1, D_out).

    Weights are stored transposed relative to PyTorch ((in, out)) so the kernel computes
    x @ W directly, which is numerically identical to PyTorch's x @ W^T.
    """
    B, D_in = x.shape
    H = w1.shape[1]
    D_out = w2.shape[1]

    # Lane-dense padding of all feature dims (zeros do not change the math: padded
    # input columns hit zero weight rows, padded hidden features are exactly zero
    # through BN/ReLU and multiply zero W2 rows, padded outputs are sliced off).
    D_in_p = _round_up(D_in, LANE)
    H_p = _round_up(H, LANE)
    D_out_p = _round_up(D_out, LANE)

    tH = _pick_tile(H_p)
    tN = _pick_tile(D_out_p)
    n_j = D_out_p // tN      # parallel axis (v7x megacore)
    n_k = H_p // tH          # reduction axis (accumulator)

    # bf16 for everything that feeds the MXU; f32 for bias / BN affine params.
    x_p = _pad2(x, (B, D_in_p)).astype(jnp.bfloat16)
    w1_p = _pad2(w1, (D_in_p, H_p)).astype(jnp.bfloat16)
    w2_p = _pad2(w2, (H_p, D_out_p)).astype(jnp.bfloat16)
    b1_p = _pad2(b1, (1, H_p)).astype(jnp.float32)
    gamma_p = _pad2(gamma, (1, H_p)).astype(jnp.float32)
    beta_p = _pad2(beta, (1, H_p)).astype(jnp.float32)
    b2_p = _pad2(b2, (1, D_out_p)).astype(jnp.float32)

    out_p = pl.pallas_call(
        mlp_kernel,
        out_shape=jax.ShapeDtypeStruct((B, D_out_p), jnp.float32),
        grid_spec=pltpu.PrefetchScalarGridSpec(
            num_scalar_prefetch=0,
            grid=(n_j, n_k),
            in_specs=[
                pl.BlockSpec((B, D_in_p), lambda j, k: (0, 0)),    # x (full batch)
                pl.BlockSpec((D_in_p, tH), lambda j, k: (0, k)),   # w1 tile
                pl.BlockSpec((1, tH), lambda j, k: (0, k)),        # b1 tile
                pl.BlockSpec((1, tH), lambda j, k: (0, k)),        # gamma tile
                pl.BlockSpec((1, tH), lambda j, k: (0, k)),        # beta tile
                pl.BlockSpec((tH, tN), lambda j, k: (k, j)),       # w2 tile
                pl.BlockSpec((1, tN), lambda j, k: (0, j)),        # b2 tile
            ],
            out_specs=pl.BlockSpec((B, tN), lambda j, k: (0, j)),
            scratch_shapes=[pltpu.VMEM((B, tN), jnp.float32)],
        ),
        compiler_params=pltpu.CompilerParams(
            dimension_semantics=("parallel", "arbitrary")),
    )(x_p, w1_p, b1_p, gamma_p, beta_p, w2_p, b2_p)

    return out_p[:, :D_out]


def reference_mlp(x, w1, b1, gamma, beta, w2, b2):
    """Plain-JAX f32 reference mirroring PyTorch semantics (train-mode BatchNorm1d)."""
    h = x @ w1 + b1
    mean = jnp.mean(h, axis=0, keepdims=True)
    var = jnp.mean((h - mean) ** 2, axis=0, keepdims=True)
    h = (h - mean) / jnp.sqrt(var + BN_EPS)
    h = h * gamma + beta
    h = jnp.maximum(h, 0.0)
    return h @ w2 + b2


def init_params(key, input_dim, hidden_dim, output_dim):
    """Deterministic init mimicking PyTorch nn.Linear defaults: U(-1/sqrt(fan_in), 1/sqrt(fan_in))."""
    k1, k2, k3, k4 = jax.random.split(key, 4)
    bound1 = 1.0 / (input_dim ** 0.5)
    bound2 = 1.0 / (hidden_dim ** 0.5)
    w1 = jax.random.uniform(k1, (input_dim, hidden_dim), jnp.float32, -bound1, bound1)
    b1 = jax.random.uniform(k2, (1, hidden_dim), jnp.float32, -bound1, bound1)
    w2 = jax.random.uniform(k3, (hidden_dim, output_dim), jnp.float32, -bound2, bound2)
    b2 = jax.random.uniform(k4, (1, output_dim), jnp.float32, -bound2, bound2)
    gamma = jnp.ones((1, hidden_dim), jnp.float32)   # BatchNorm1d affine defaults
    beta = jnp.zeros((1, hidden_dim), jnp.float32)
    return w1, b1, gamma, beta, w2, b2


if __name__ == "__main__":
    # Small shapes consistent with the module's forward: x is (batch, input_dim).
    batch, input_dim, hidden_dim, output_dim = 8, 32, 64, 16

    key = jax.random.PRNGKey(0)
    kx, kp = jax.random.split(key)
    x = jax.random.normal(kx, (batch, input_dim), jnp.float32)
    params = init_params(kp, input_dim, hidden_dim, output_dim)

    out = mlp_network(x, *params)
    out = jax.block_until_ready(out)

    ref = reference_mlp(x, *params)
    assert out.shape == (batch, output_dim)
    # bf16 MXU inputs with f32 accumulation -> slightly looser tolerance than pure f32.
    assert jnp.allclose(out, ref, atol=2e-2, rtol=2e-2), "mismatch vs. JAX reference"

    print("KERNEL_OK")
</pallas_src>

<mosaic_0001>
module attributes {stable_mosaic.version = 11 : i64} {
  func.func @mlp_kernel(%arg0: i32, %arg1: i32, %arg2: memref<8x128xbf16, #tpu.memory_space<vmem>>, %arg3: memref<128x128xbf16, #tpu.memory_space<vmem>>, %arg4: memref<1x128xf32, #tpu.memory_space<vmem>>, %arg5: memref<1x128xf32, #tpu.memory_space<vmem>>, %arg6: memref<1x128xf32, #tpu.memory_space<vmem>>, %arg7: memref<128x128xbf16, #tpu.memory_space<vmem>>, %arg8: memref<1x128xf32, #tpu.memory_space<vmem>>, %arg9: memref<8x128xf32, #tpu.memory_space<vmem>>, %arg10: memref<8x128xf32, #tpu.memory_space<vmem>>) attributes {dimension_semantics = [#tpu.dimension_semantics<parallel>, #tpu.dimension_semantics<arbitrary>], iteration_bounds = array<i64: 1, 1>, scalar_prefetch = 0 : i64, scratch_operands = 1 : i64, tpu.core_type = #tpu.core_type<tc>, window_params = [{pipeline_mode = #tpu.pipeline_mode<synchronous>, transform_indices = @transform_0, window_bounds = array<i64: 8, 128>}, {transform_indices = @transform_1, window_bounds = array<i64: 128, 128>}, {transform_indices = @transform_2, window_bounds = array<i64: 1, 128>}, {transform_indices = @transform_3, window_bounds = array<i64: 1, 128>}, {transform_indices = @transform_4, window_bounds = array<i64: 1, 128>}, {transform_indices = @transform_5, window_bounds = array<i64: 128, 128>}, {transform_indices = @transform_6, window_bounds = array<i64: 1, 128>}, {transform_indices = @transform_7, window_bounds = array<i64: 8, 128>}]} {
    %c0_i32 = arith.constant 0 : i32
    %0 = arith.cmpi eq, %arg1, %c0_i32 : i32
    %1 = arith.extui %0 : i1 to i32
    %c0_i32_0 = arith.constant 0 : i32
    %2 = arith.cmpi ne, %1, %c0_i32_0 : i32
    scf.if %2 {
      %cst_26 = arith.constant 0.000000e+00 : f32
      %45 = vector.broadcast %cst_26 : f32 to vector<8x128xf32>
      %c0_27 = arith.constant 0 : index
      %c0_28 = arith.constant 0 : index
      %46 = vector.load %arg10[%c0_27, %c0_28] : memref<8x128xf32, #tpu.memory_space<vmem>>, vector<8x128xf32>
      tpu.vector_store %arg10[%c0_27, %c0_28], %45 {strides = array<i32>} : memref<8x128xf32, #tpu.memory_space<vmem>>, vector<8x128xf32>,
    } else {
    }
    %c0 = arith.constant 0 : index
    %c0_1 = arith.constant 0 : index
    %3 = vector.load %arg2[%c0, %c0_1] : memref<8x128xbf16, #tpu.memory_space<vmem>>, vector<8x128xbf16>
    %c0_2 = arith.constant 0 : index
    %c0_3 = arith.constant 0 : index
    %4 = vector.load %arg3[%c0_2, %c0_3] : memref<128x128xbf16, #tpu.memory_space<vmem>>, vector<128x128xbf16>
    %cst = arith.constant dense<0.000000e+00> : vector<8x128xf32>
    %5 = tpu.matmul %3, %4, %cst {dimension_numbers = #tpu.dot_dimension_numbers<[1], [0], [0], [1], [0, 0, 1, 1], [], []>} : vector<8x128xbf16>, vector<128x128xbf16>, vector<8x128xf32> -> vector<8x128xf32>
    %c0_4 = arith.constant 0 : index
    %c0_5 = arith.constant 0 : index
    %6 = vector.load %arg4[%c0_4, %c0_5] : memref<1x128xf32, #tpu.memory_space<vmem>>, vector<1x128xf32>
    %7 = vector.broadcast %6 : vector<1x128xf32> to vector<8x128xf32>
    %8 = arith.addf %5, %7 : vector<8x128xf32>
    %cst_6 = arith.constant dense<0.000000e+00> : vector<128xf32>
    %9 = vector.multi_reduction <add>, %8, %cst_6 [0] : vector<8x128xf32> to vector<128xf32>
    %10 = vector.shape_cast %9 : vector<128xf32> to vector<1x128xf32>
    %cst_7 = arith.constant 8.000000e+00 : f32
    %11 = vector.broadcast %cst_7 : f32 to vector<1x128xf32>
    %12 = arith.divf %10, %11 : vector<1x128xf32>
    %13 = arith.mulf %8, %8 : vector<8x128xf32>
    %cst_8 = arith.constant dense<0.000000e+00> : vector<128xf32>
    %14 = vector.multi_reduction <add>, %13, %cst_8 [0] : vector<8x128xf32> to vector<128xf32>
    %15 = vector.shape_cast %14 : vector<128xf32> to vector<1x128xf32>
    %cst_9 = arith.constant 8.000000e+00 : f32
    %16 = vector.broadcast %cst_9 : f32 to vector<1x128xf32>
    %17 = arith.divf %15, %16 : vector<1x128xf32>
    %18 = arith.mulf %12, %12 : vector<1x128xf32>
    %19 = arith.subf %17, %18 : vector<1x128xf32>
    %c0_10 = arith.constant 0 : index
    %c0_11 = arith.constant 0 : index
    %20 = vector.load %arg5[%c0_10, %c0_11] : memref<1x128xf32, #tpu.memory_space<vmem>>, vector<1x128xf32>
    %cst_12 = arith.constant 0.000000e+00 : f32
    %21 = vector.broadcast %cst_12 : f32 to vector<1x128xf32>
    %22 = arith.maximumf %19, %21 : vector<1x128xf32>
    %cst_13 = arith.constant 9.99999974E-6 : f32
    %23 = vector.broadcast %cst_13 : f32 to vector<1x128xf32>
    %24 = arith.addf %22, %23 : vector<1x128xf32>
    %25 = math.rsqrt %24 : vector<1x128xf32>
    %26 = arith.mulf %20, %25 : vector<1x128xf32>
    %c0_14 = arith.constant 0 : index
    %c0_15 = arith.constant 0 : index
    %27 = vector.load %arg6[%c0_14, %c0_15] : memref<1x128xf32, #tpu.memory_space<vmem>>, vector<1x128xf32>
    %28 = arith.mulf %12, %26 : vector<1x128xf32>
    %29 = arith.subf %27, %28 : vector<1x128xf32>
    %30 = vector.broadcast %26 : vector<1x128xf32> to vector<8x128xf32>
    %31 = arith.mulf %8, %30 : vector<8x128xf32>
    %32 = vector.broadcast %29 : vector<1x128xf32> to vector<8x128xf32>
    %33 = arith.addf %31, %32 : vector<8x128xf32>
    %cst_16 = arith.constant 0.000000e+00 : f32
    %34 = vector.broadcast %cst_16 : f32 to vector<8x128xf32>
    %35 = arith.maximumf %33, %34 : vector<8x128xf32>
    %c0_17 = arith.constant 0 : index
    %c0_18 = arith.constant 0 : index
    %36 = vector.load %arg10[%c0_17, %c0_18] : memref<8x128xf32, #tpu.memory_space<vmem>>, vector<8x128xf32>
    %37 = arith.truncf %35 : vector<8x128xf32> to vector<8x128xbf16>
    %c0_19 = arith.constant 0 : index
    %c0_20 = arith.constant 0 : index
    %38 = vector.load %arg7[%c0_19, %c0_20] : memref<128x128xbf16, #tpu.memory_space<vmem>>, vector<128x128xbf16>
    %cst_21 = arith.constant dense<0.000000e+00> : vector<8x128xf32>
    %39 = tpu.matmul %37, %38, %cst_21 {dimension_numbers = #tpu.dot_dimension_numbers<[1], [0], [0], [1], [0, 0, 1, 1], [], []>} : vector<8x128xbf16>, vector<128x128xbf16>, vector<8x128xf32> -> vector<8x128xf32>
    %40 = arith.addf %36, %39 : vector<8x128xf32>
    %c0_22 = arith.constant 0 : index
    %c0_23 = arith.constant 0 : index
    %41 = vector.load %arg10[%c0_22, %c0_23] : memref<8x128xf32, #tpu.memory_space<vmem>>, vector<8x128xf32>
    tpu.vector_store %arg10[%c0_22, %c0_23], %40 {strides = array<i32>} : memref<8x128xf32, #tpu.memory_space<vmem>>, vector<8x128xf32>,
    %c0_i32_24 = arith.constant 0 : i32
    %42 = arith.cmpi eq, %arg1, %c0_i32_24 : i32
    %43 = arith.extui %42 : i1 to i32
    %c0_i32_25 = arith.constant 0 : i32
    %44 = arith.cmpi ne, %43, %c0_i32_25 : i32
    scf.if %44 {
      %c0_26 = arith.constant 0 : index
      %c0_27 = arith.constant 0 : index
      %45 = vector.load %arg10[%c0_26, %c0_27] : memref<8x128xf32, #tpu.memory_space<vmem>>, vector<8x128xf32>
      %c0_28 = arith.constant 0 : index
      %c0_29 = arith.constant 0 : index
      %46 = vector.load %arg8[%c0_28, %c0_29] : memref<1x128xf32, #tpu.memory_space<vmem>>, vector<1x128xf32>
      %47 = vector.broadcast %46 : vector<1x128xf32> to vector<8x128xf32>
      %48 = arith.addf %45, %47 : vector<8x128xf32>
      %c0_30 = arith.constant 0 : index
      %c0_31 = arith.constant 0 : index
      %49 = vector.load %arg9[%c0_30, %c0_31] : memref<8x128xf32, #tpu.memory_space<vmem>>, vector<8x128xf32>
      tpu.vector_store %arg9[%c0_30, %c0_31], %48 {strides = array<i32>} : memref<8x128xf32, #tpu.memory_space<vmem>>, vector<8x128xf32>,
    } else {
    }
    return
  }
  func.func @transform_0(%arg0: i32, %arg1: i32) -> (i32, i32) {
    %c0_i32 = arith.constant 0 : i32
    %c0_i32_0 = arith.constant 0 : i32
    %c0_i32_1 = arith.constant 0 : i32
    return %c0_i32, %c0_i32_0 : i32, i32
  }
  func.func @transform_1(%arg0: i32, %arg1: i32) -> (i32, i32) {
    %c0_i32 = arith.constant 0 : i32
    %c0_i32_0 = arith.constant 0 : i32
    return %c0_i32, %arg1 : i32, i32
  }
  func.func @transform_2(%arg0: i32, %arg1: i32) -> (i32, i32) {
    %c0_i32 = arith.constant 0 : i32
    %c0_i32_0 = arith.constant 0 : i32
    return %c0_i32, %arg1 : i32, i32
  }
  func.func @transform_3(%arg0: i32, %arg1: i32) -> (i32, i32) {
    %c0_i32 = arith.constant 0 : i32
    %c0_i32_0 = arith.constant 0 : i32
    return %c0_i32, %arg1 : i32, i32
  }
  func.func @transform_4(%arg0: i32, %arg1: i32) -> (i32, i32) {
    %c0_i32 = arith.constant 0 : i32
    %c0_i32_0 = arith.constant 0 : i32
    return %c0_i32, %arg1 : i32, i32
  }
  func.func @transform_5(%arg0: i32, %arg1: i32) -> (i32, i32) {
    %c0_i32 = arith.constant 0 : i32
    return %arg1, %arg0 : i32, i32
  }
  func.func @transform_6(%arg0: i32, %arg1: i32) -> (i32, i32) {
    %c0_i32 = arith.constant 0 : i32
    %c0_i32_0 = arith.constant 0 : i32
    return %c0_i32, %arg0 : i32, i32
  }
  func.func @transform_7(%arg0: i32, %arg1: i32) -> (i32, i32) {
    %c0_i32 = arith.constant 0 : i32
    %c0_i32_0 = arith.constant 0 : i32
    return %c0_i32, %arg0 : i32, i32
  }
}

</mosaic_0001>

<llo_original>
// kernel: tpu_custom_call.1
$region0: #{tpu_custom_call.1}
  #allocation0 [shape = 'u32[]', space=smem, size = 0x4, offset = 0x4, fixed_abs, tag = 'smem constant byte address 0x4 - core index']
  #allocation1 [shape = 'u32[72,128]{1,0:T(1,128)}', space=vmem, size = 0x9000, scoped, tag = 'internal scratch']
  #allocation2 [shape = 'f32[8,128]{1,0:T(8,128)}', space=vmem, size = 0x1000, scoped, tag = 'scratch operand']
  %s0 = inlined_call_operand.hbm [shape: bf16[8,128], index: 0, kind: input, shape index: {}]
  %s1 = inlined_call_operand.hbm [shape: bf16[128,128], index: 1, kind: input, shape index: {}]
  %s2 = inlined_call_operand.vmem [shape: f32[1,128], index: 2, kind: input, shape index: {}]
  %s3 = inlined_call_operand.vmem [shape: f32[1,128], index: 3, kind: input, shape index: {}]
  %s4 = inlined_call_operand.vmem [shape: f32[1,128], index: 4, kind: input, shape index: {}]
  %s5 = inlined_call_operand.hbm [shape: bf16[128,128], index: 5, kind: input, shape index: {}]
  %s6 = inlined_call_operand.vmem [shape: f32[1,128], index: 6, kind: input, shape index: {}]
  %s7 = inlined_call_operand.hbm [shape: f32[8,128], index: 7, kind: output, shape index: {}]
  %s8 = sld [smem:[#allocation0]]
  $region58: #{tpu_custom_call.1} parent=0
    _
  %s10 = ssub.s32 1, %s8
  %s11 = scalar_select 0, %s10, %s8
  $region1: #{tpu_custom_call.1} parent=0
    #allocation3 [shape = 'u8[2048]{0}', space=vmem, size = 0x800, scoped, tag = 'input window, operand 0, single buffered']
    #allocation4 [shape = 's32[1]{0}', space=sflag, size = 0x4, scoped, tag = 'scoped memory for tpu_custom_call.1']
    #allocation5 [shape = 's32[1]{0}', space=sflag, size = 0x4, scoped, tag = 'scoped memory for tpu_custom_call.1']
    #allocation6 [shape = 'u8[32768]{0}', space=vmem, size = 0x8000, scoped, tag = 'input window, operand 1, single buffered']
    #allocation7 [shape = 's32[1]{0}', space=sflag, size = 0x4, scoped, tag = 'scoped memory for tpu_custom_call.1']
    #allocation8 [shape = 'u8[32768]{0}', space=vmem, size = 0x8000, scoped, tag = 'input window, operand 5, single buffered']
    #allocation9 [shape = 'u8[4096]{0}', space=vmem, size = 0x1000, scoped, tag = 'output window, operand 0, single buffered']
    %12 = vsyncpa [#allocation4], 0
    %13 = vsyncpa [#allocation7], 0
    %14 = vsyncpa [#allocation5], 0
    // Predicated region
    $region2: #{tpu_custom_call.1} parent=1 // pred_check
      _
    $region3: #{tpu_custom_call.1} parent=1 // pred_check_branch
      %16 = sbr.rel (0) target = $region5
    $region4: #{tpu_custom_call.1} parent=1 // pred_region
      %18 = vsyncadd [#allocation4], 0
      %s20 = sshll.u32 %s0, 4
      %s21 = int_to_ptr.hbm [resolvable:$true] %s20
      %s22 = sshll.u32 [#allocation3], 4
      %s23 = int_to_ptr.vmem [resolvable:$true] %s22
      %25 = dma.hbm_to_vmem [thread:$0]  %s21, 64, %s23, [#allocation4]
    $region5: #{tpu_custom_call.1} parent=1 // pred_fallthru
      _
    // Predicated region
    $region6: #{tpu_custom_call.1} parent=1 // pred_check
      _
    $region7: #{tpu_custom_call.1} parent=1 // pred_check_branch
      %27 = sbr.rel (0) target = $region9
    $region8: #{tpu_custom_call.1} parent=1 // pred_region
      %29 = vsyncadd [#allocation7], 0
      %s30 = sshll.u32 %s1, 4
      %s31 = int_to_ptr.hbm [resolvable:$true] %s30
      %s32 = sshll.u32 [#allocation6], 4
      %s33 = int_to_ptr.vmem [resolvable:$true] %s32
      %38 = dma.hbm_to_vmem [thread:$0]  %s31, 1024, %s33, [#allocation7], 64, 64, 4
    $region9: #{tpu_custom_call.1} parent=1 // pred_fallthru
      _
    // Predicated region
    $region10: #{tpu_custom_call.1} parent=1 // pred_check
      _
    $region11: #{tpu_custom_call.1} parent=1 // pred_check_branch
      %40 = sbr.rel (0) target = $region13
    $region12: #{tpu_custom_call.1} parent=1 // pred_region
      _
    $region13: #{tpu_custom_call.1} parent=1 // pred_fallthru
      _
    // Predicated region
    $region14: #{tpu_custom_call.1} parent=1 // pred_check
      _
    $region15: #{tpu_custom_call.1} parent=1 // pred_check_branch
      %42 = sbr.rel (0) target = $region17
    $region16: #{tpu_custom_call.1} parent=1 // pred_region
      _
    $region17: #{tpu_custom_call.1} parent=1 // pred_fallthru
      _
    // Predicated region
    $region18: #{tpu_custom_call.1} parent=1 // pred_check
      _
    $region19: #{tpu_custom_call.1} parent=1 // pred_check_branch
      %44 = sbr.rel (0) target = $region21
    $region20: #{tpu_custom_call.1} parent=1 // pred_region
      _
    $region21: #{tpu_custom_call.1} parent=1 // pred_fallthru
      _
    // Predicated region
    $region22: #{tpu_custom_call.1} parent=1 // pred_check
      _
    $region23: #{tpu_custom_call.1} parent=1 // pred_check_branch
      %46 = sbr.rel (0) target = $region25
    $region24: #{tpu_custom_call.1} parent=1 // pred_region
      %48 = vsyncadd [#allocation7], 0
      %s49 = sshll.u32 %s5, 4
      %s50 = int_to_ptr.hbm [resolvable:$true] %s49
      %s51 = sshll.u32 [#allocation8], 4
      %s52 = int_to_ptr.vmem [resolvable:$true] %s51
      %57 = dma.hbm_to_vmem [thread:$0]  %s50, 1024, %s52, [#allocation7], 64, 64, 4
    $region25: #{tpu_custom_call.1} parent=1 // pred_fallthru
      _
    // Predicated region
    $region26: #{tpu_custom_call.1} parent=1 // pred_check
      _
    $region27: #{tpu_custom_call.1} parent=1 // pred_check_branch
      %59 = sbr.rel (0) target = $region29
    $region28: #{tpu_custom_call.1} parent=1 // pred_region
      _
    $region29: #{tpu_custom_call.1} parent=1 // pred_fallthru
      _
    // Predicated region
    $region30: #{tpu_custom_call.1} parent=1 // pred_check
      _
    $region31: #{tpu_custom_call.1} parent=1 // pred_check_branch
      %61 = sbr.rel (0) target = $region33
    $region32: #{tpu_custom_call.1} parent=1 // pred_region
      %63 = dma.done [#allocation4], 64
    $region33: #{tpu_custom_call.1} parent=1 // pred_fallthru
      _
    // Predicated region
    $region34: #{tpu_custom_call.1} parent=1 // pred_check
      _
    $region35: #{tpu_custom_call.1} parent=1 // pred_check_branch
      %65 = sbr.rel (0) target = $region37
    $region36: #{tpu_custom_call.1} parent=1 // pred_region
      %67 = dma.done [#allocation7], 1024
    $region37: #{tpu_custom_call.1} parent=1 // pred_fallthru
      _
    // Predicated region
    $region38: #{tpu_custom_call.1} parent=1 // pred_check
      _
    $region39: #{tpu_custom_call.1} parent=1 // pred_check_branch
      %69 = sbr.rel (0) target = $region41
    $region40: #{tpu_custom_call.1} parent=1 // pred_region
      %71 = dma.done [#allocation7], 1024
    $region41: #{tpu_custom_call.1} parent=1 // pred_fallthru
      _
    %p72 = scmp.eq.s32.totalorder 0, 0
    // Predicated region
    $region42: #{tpu_custom_call.1} parent=1 // pred_check
      %p73 = pneg %p72
    $region43: #{tpu_custom_call.1} parent=1 // pred_check_branch
      %75 = sbr.rel (%p73) target = $region45
    $region44: #{tpu_custom_call.1} parent=1 // pred_region
      %76 = vst [vmem:[#allocation2] sm:$0xff] 0.0
    $region45: #{tpu_custom_call.1} parent=1 // pred_fallthru
      _
    %v77 = vld [vmem:[#allocation3] sm:$0xf]
    %v78 = vld [vmem:[#allocation6] sm:$0xf]
    %v79 = vld [vmem:[#allocation6 + $0x4] sm:$0xf]
    %v80 = vld [vmem:[#allocation6 + $0x8] sm:$0xf]
    %v81 = vld [vmem:[#allocation6 + $0xc] sm:$0xf]
    %v82 = vld [vmem:[#allocation6 + $0x10] sm:$0xf]
    %v83 = vld [vmem:[#allocation6 + $0x14] sm:$0xf]
    %v84 = vld [vmem:[#allocation6 + $0x18] sm:$0xf]
    %v85 = vld [vmem:[#allocation6 + $0x1c] sm:$0xf]
    %v86 = vld [vmem:[#allocation6 + $0x20] sm:$0xf]
    %v87 = vld [vmem:[#allocation6 + $0x24] sm:$0xf]
    %v88 = vld [vmem:[#allocation6 + $0x28] sm:$0xf]
    %v89 = vld [vmem:[#allocation6 + $0x2c] sm:$0xf]
    %v90 = vld [vmem:[#allocation6 + $0x30] sm:$0xf]
    %v91 = vld [vmem:[#allocation6 + $0x34] sm:$0xf]
    %v92 = vld [vmem:[#allocation6 + $0x38] sm:$0xf]
    %v93 = vld [vmem:[#allocation6 + $0x3c] sm:$0xf]
    %v94 = vld [vmem:[%s2] sm:$0x1]
    %v96 = vperm.slane %v94, 0
    %v114 = vunpack.c.l.b16 %v78
    %v115 = vunpack.c.l.b16 %v79
    %v116 = vunpack.c.l.b16 %v80
    %v117 = vunpack.c.l.b16 %v81
    %v118 = vunpack.c.l.b16 %v82
    %v119 = vunpack.c.l.b16 %v83
    %v120 = vunpack.c.l.b16 %v84
    %v121 = vunpack.c.l.b16 %v85
    %v122 = vunpack.c.l.b16 %v86
    %v123 = vunpack.c.l.b16 %v87
    %v124 = vunpack.c.l.b16 %v88
    %v125 = vunpack.c.l.b16 %v89
    %v126 = vunpack.c.l.b16 %v90
    %v127 = vunpack.c.l.b16 %v91
    %v128 = vunpack.c.l.b16 %v92
    %v129 = vunpack.c.l.b16 %v93
    %v130 = vpack.c.b16 %v115, %v114
    %v131 = vpack.c.b16 %v117, %v116
    %v132 = vpack.c.b16 %v119, %v118
    %v133 = vpack.c.b16 %v121, %v120
    %v134 = vpack.c.b16 %v123, %v122
    %v135 = vpack.c.b16 %v125, %v124
    %v136 = vpack.c.b16 %v127, %v126
    %v137 = vpack.c.b16 %v129, %v128
    %146 = vmatpush.bf16.msra.mxu0 %v137
    %147 = vmatpush.bf16.msra.mxu0 %v136
    %148 = vmatpush.bf16.msra.mxu0 %v135
    %149 = vmatpush.bf16.msra.mxu0 %v134
    %150 = vmatpush.bf16.msra.mxu0 %v133
    %151 = vmatpush.bf16.msra.mxu0 %v132
    %152 = vmatpush.bf16.msra.mxu0 %v131
    %153 = vmatpush.bf16.msra.mxu0 %v130
    %154 = vmatmul.bf16.gmra.mxu0 %v77
    %v155 = vpop.f32.mrf.mxu0
    %v156 = vadd.f32 %v96, %v155
    %v157 = vpop.f32.mrf.mxu0
    %158 = vdwg.mxu0
    %v159 = vrot.slane %v156, 4
    %v160 = vadd.f32 %v156, %v159
    %v161 = vrot.slane %v160, 2
    %v162 = vadd.f32 %v160, %v161
    %v163 = vrot.slane %v162, 1
    %v164 = vadd.f32 %v162, %v163
    %v165 = vrcp.pop 8.0
    %v166 = vmul.f32 8.0, %v165
    %v167 = vsub.f32 1.0, %v166
    %v168 = vmul.f32 %v165, %v167
    %v169 = vadd.f32 %v165, %v168
    %vm170 = vweird.f32 %v165
    %v171 = vsel %vm170, %v165, %v169
    %v172 = vmul.f32 %v164, %v171
    %v173 = vmul.f32 %v156, %v156
    %v174 = vrot.slane %v173, 4
    %v175 = vadd.f32 %v173, %v174
    %v176 = vrot.slane %v175, 2
    %v177 = vadd.f32 %v175, %v176
    %v178 = vrot.slane %v177, 1
    %v179 = vadd.f32 %v177, %v178
    %v180 = vmul.f32 %v179, %v171
    %v181 = vmul.f32 %v172, %v172
    %v182 = vsub.f32 %v180, %v181
    %v183 = vld [vmem:[%s3] sm:$0x1]
    %v184 = vmax.f32 %v182, 0.0
    %v185 = vadd.f32 %v184, 1e-05
    %v186 = vrsqrt.pop %v185
    %v187 = vmul.f32 %v186, %v185
    %v188 = vmul.f32 %v187, %v186
    %v189 = vmul.f32 0.5, %v188
    %v190 = vsub.f32 1.5, %v189
    %v191 = vmul.f32 %v186, %v190
    %vm192 = vweird.f32 %v185
    %vm193 = vweird.f32 %v186
    %vm194 = vmor %vm192, %vm193
    %v195 = vsel %vm194, %v186, %v191
    %v196 = vmul.f32 %v183, %v195
    %v197 = vld [vmem:[%s4] sm:$0x1]
    %v198 = vmul.f32 %v172, %v196
    %v199 = vsub.f32 %v197, %v198
    %v201 = vperm.slane %v196, 0
    %v203 = vmul.f32 %v156, %v201
    %v205 = vperm.slane %v199, 0
    %v207 = vadd.f32 %v203, %v205
    %v208 = vmax.f32 %v207, 0.0
    %v209 = vld [vmem:[#allocation2] sm:$0xff]
    %v210 = vpack.c.bf16 %v208, %v208
    %v211 = vld [vmem:[#allocation8] sm:$0xf]
    %v212 = vld [vmem:[#allocation8 + $0x4] sm:$0xf]
    %v213 = vld [vmem:[#allocation8 + $0x8] sm:$0xf]
    %v214 = vld [vmem:[#allocation8 + $0xc] sm:$0xf]
    %v215 = vld [vmem:[#allocation8 + $0x10] sm:$0xf]
    %v216 = vld [vmem:[#allocation8 + $0x14] sm:$0xf]
    %v217 = vld [vmem:[#allocation8 + $0x18] sm:$0xf]
    %v218 = vld [vmem:[#allocation8 + $0x1c] sm:$0xf]
    %v219 = vld [vmem:[#allocation8 + $0x20] sm:$0xf]
    %v220 = vld [vmem:[#allocation8 + $0x24] sm:$0xf]
    %v221 = vld [vmem:[#allocation8 + $0x28] sm:$0xf]
    %v222 = vld [vmem:[#allocation8 + $0x2c] sm:$0xf]
    %v223 = vld [vmem:[#allocation8 + $0x30] sm:$0xf]
    %v224 = vld [vmem:[#allocation8 + $0x34] sm:$0xf]
    %v225 = vld [vmem:[#allocation8 + $0x38] sm:$0xf]
    %v226 = vld [vmem:[#allocation8 + $0x3c] sm:$0xf]
    %v243 = vunpack.c.l.b16 %v211
    %v244 = vunpack.c.l.b16 %v212
    %v245 = vunpack.c.l.b16 %v213
    %v246 = vunpack.c.l.b16 %v214
    %v247 = vunpack.c.l.b16 %v215
    %v248 = vunpack.c.l.b16 %v216
    %v249 = vunpack.c.l.b16 %v217
    %v250 = vunpack.c.l.b16 %v218
    %v251 = vunpack.c.l.b16 %v219
    %v252 = vunpack.c.l.b16 %v220
    %v253 = vunpack.c.l.b16 %v221
    %v254 = vunpack.c.l.b16 %v222
    %v255 = vunpack.c.l.b16 %v223
    %v256 = vunpack.c.l.b16 %v224
    %v257 = vunpack.c.l.b16 %v225
    %v258 = vunpack.c.l.b16 %v226
    %v259 = vpack.c.b16 %v244, %v243
    %v260 = vpack.c.b16 %v246, %v245
    %v261 = vpack.c.b16 %v248, %v247
    %v262 = vpack.c.b16 %v250, %v249
    %v263 = vpack.c.b16 %v252, %v251
    %v264 = vpack.c.b16 %v254, %v253
    %v265 = vpack.c.b16 %v256, %v255
    %v266 = vpack.c.b16 %v258, %v257
    %275 = vmatpush.bf16.msra.mxu0 %v266
    %276 = vmatpush.bf16.msra.mxu0 %v265
    %277 = vmatpush.bf16.msra.mxu0 %v264
    %278 = vmatpush.bf16.msra.mxu0 %v263
    %279 = vmatpush.bf16.msra.mxu0 %v262
    %280 = vmatpush.bf16.msra.mxu0 %v261
    %281 = vmatpush.bf16.msra.mxu0 %v260
    %282 = vmatpush.bf16.msra.mxu0 %v259
    %283 = vmatmul.bf16.gmra.mxu0 %v210
    %v284 = vpop.f32.mrf.mxu0
    %v285 = vadd.f32 0.0, %v284
    %v286 = vpop.f32.mrf.mxu0
    %287 = vdwg.mxu0
    %v288 = vadd.f32 %v209, %v285
    %289 = vst [vmem:[#allocation2] sm:$0xff] %v288
    // Predicated region
    $region46: #{tpu_custom_call.1} parent=1 // pred_check
      %p290 = pneg %p72
    $region47: #{tpu_custom_call.1} parent=1 // pred_check_branch
      %292 = sbr.rel (%p290) target = $region49
    $region48: #{tpu_custom_call.1} parent=1 // pred_region
      %v293 = vld [vmem:[#allocation2] sm:$0xff]
      %v294 = vld [vmem:[%s6] sm:$0x1]
      %v296 = vperm.slane %v294, 0
      %v298 = vadd.f32 %v293, %v296
      %299 = vst [vmem:[#allocation9] sm:$0xff] %v298
    $region49: #{tpu_custom_call.1} parent=1 // pred_fallthru
      _
    // Predicated region
    $region50: #{tpu_custom_call.1} parent=1 // pred_check
      _
    $region51: #{tpu_custom_call.1} parent=1 // pred_check_branch
      %301 = sbr.rel (0) target = $region53
    $region52: #{tpu_custom_call.1} parent=1 // pred_region
      %303 = vsyncadd [#allocation5], 0
      %s305 = sshll.u32 [#allocation9], 4
      %s306 = int_to_ptr.vmem [resolvable:$true] %s305
      %s307 = sshll.u32 %s7, 4
      %s308 = int_to_ptr.hbm [resolvable:$true] %s307
      %310 = dma.vmem_to_hbm [thread:$0]  %s306, 128, %s308, [#allocation5]
    $region53: #{tpu_custom_call.1} parent=1 // pred_fallthru
      _
    // Predicated region
    $region54: #{tpu_custom_call.1} parent=1 // pred_check
      _
    $region55: #{tpu_custom_call.1} parent=1 // pred_check_branch
      %312 = sbr.rel (0) target = $region57
    $region56: #{tpu_custom_call.1} parent=1 // pred_region
      %314 = dma.done [#allocation5], 128
    $region57: #{tpu_custom_call.1} parent=1 // pred_fallthru
      _
    %315 = vsyncpa [#allocation4], 1
    %316 = vsyncpa [#allocation7], 1
    %317 = vsyncpa [#allocation5], 1

</llo_original>
